<compile_context>
chip_gen: v5e
topology: v5e:2x2
jax: 0.10.0
libtpu: 0.0.40
codegen_flags: <defaults>
</compile_context>

<pallas_src>
import jax
import jax.numpy as jnp
from jax import lax
from jax.experimental import pallas as pl
from jax.experimental.pallas import tpu as pltpu

_EPS2 = 1e-24   # (F.normalize eps = 1e-12)^2
_TINY = 1e-30   # floor for the fixed-stabilizer sum-exp before log


def _colnorm_kernel(r_ref, out_ref):
    """Inverse L2 norm of each feature column of replicas (i.e. of each row of
    replicas.T), accumulated over row tiles of replicas."""
    i = pl.program_id(0)

    @pl.when(i == 0)
    def _():
        out_ref[...] = jnp.zeros_like(out_ref)

    r = r_ref[...].astype(jnp.float32)
    out_ref[...] += jnp.sum(r * r, axis=0, keepdims=True)

    @pl.when(i == pl.num_programs(0) - 1)
    def _():
        out_ref[...] = lax.rsqrt(jnp.maximum(out_ref[...], _EPS2))


def _vmem_bytes(B, D, T, r_bytes, mxu_bytes, resident):
    """Conservative VMEM footprint estimate for a (T x T) logits tiling."""
    nJ = B // T
    need = 2 * T * D * 4                                        # anchors tile (f32, 2 bufs)
    need += (2 * B * D if resident else 2 * T * D) * r_bytes    # replicas
    need += T * D * mxu_bytes                                   # a_sc scratch
    need += 3 * T * T * 4                                       # (T,T) logits/exp temporaries
    need += 3 * nJ * 8 * T * 4                                  # column accumulators (padded)
    need += 3 * T * 128 * 4                                     # (T,1) row accumulators (padded)
    need += 4 * 8 * max(D, 128) * 4                             # inv_cn block + slack
    return need


def _choose_tile(B, D, r_bytes, mxu_bytes, budget):
    cands = [t for t in (1024, 512, 256, 128, 64, 32, 16, 8) if t <= B and B % t == 0]
    if not cands:
        cands = [B]            # tiny / odd batch: single full-size tile
    T = cands[-1]
    for t in cands:            # descending -> largest tile that fits
        if _vmem_bytes(B, D, t, r_bytes, mxu_bytes, resident=False) <= budget:
            T = t
            break
    return T


def infonce_loss(anchors, replicas, temperature, *, tile=None, use_bf16=True,
                 resident=None):
    """anchors, replicas: (B, D) float32. temperature: (1,) float32 parameter.
    Returns (loss, accuracy) scalars."""
    B, D = anchors.shape
    assert replicas.shape == (B, D)

    mxu_dtype = jnp.bfloat16 if use_bf16 else jnp.float32
    r_bytes = 2 if use_bf16 else 4
    mxu_bytes = r_bytes

    # generation-aware VMEM budget (~85% of per-core capacity)
    try:
        vmem_cap = pltpu.get_tpu_info().vmem_capacity_bytes
    except Exception:
        vmem_cap = 64 * 1024 * 1024
    budget = max(32 * 1024 * 1024, int(vmem_cap * 0.85))
    vmem_limit = budget

    T = tile if tile is not None else _choose_tile(B, D, r_bytes, mxu_bytes, budget)
    assert B % T == 0, "batch must be divisible by the tile size"
    if resident is None:
        resident = _vmem_bytes(B, D, T, r_bytes, mxu_bytes, resident=True) <= budget
    nI = nJ = B // T

    anchors_f32 = anchors.astype(jnp.float32)
    replicas_f32 = replicas.astype(jnp.float32)
    replicas_mxu = replicas.astype(mxu_dtype)

    # --- pre-pass: inverse per-feature (column) norms of replicas (f32) -----
    inv_cn = pl.pallas_call(
        _colnorm_kernel,
        grid=(nI,),
        in_specs=[pl.BlockSpec((T, D), lambda i: (i, 0))],
        out_specs=pl.BlockSpec((1, D), lambda i: (0, 0)),
        out_shape=jax.ShapeDtypeStruct((1, D), jnp.float32),
        compiler_params=pltpu.CompilerParams(
            dimension_semantics=("arbitrary",),
            vmem_limit_bytes=vmem_limit,
        ),
    )(replicas_f32)

    # --- main tiled kernel ---------------------------------------------------
    def kernel(temp_ref, inv_cn_ref, a_ref, r_ref, loss_ref, acc_ref,
               a_sc, m_r, l_r, d_r, col_m, col_l, col_d, sums):
        i = pl.program_id(0)   # row-tile index (outer)
        j = pl.program_id(1)   # col-tile index (inner)

        scale = jnp.minimum(jnp.exp(temp_ref[0]), 100.0)

        # global init: scalar accumulators + column online-softmax state
        @pl.when((i == 0) & (j == 0))
        def _():
            sums[0] = jnp.float32(0.0)   # sum over rows of (lse - diag)
            sums[1] = jnp.float32(0.0)   # sum over cols of (lse - diag)
            sums[2] = jnp.float32(0.0)   # total correct (rows + cols)
            col_m[...] = jnp.full_like(col_m, -jnp.inf)
            col_l[...] = jnp.zeros_like(col_l)

        # per row tile: scaled anchors computed once (f32 math, bf16 store)
        @pl.when(j == 0)
        def _():
            a = a_ref[...].astype(jnp.float32)
            inv_rn = lax.rsqrt(
                jnp.maximum(jnp.sum(a * a, axis=1, keepdims=True), _EPS2))
            # fold row norm, column norms of replicas, and temperature into `a`
            a_sc[...] = (a * inv_rn * (inv_cn_ref[...] * scale)).astype(mxu_dtype)
            m_r[...] = jnp.full_like(m_r, -jnp.inf)
            l_r[...] = jnp.zeros_like(l_r)

        if resident:
            off = pl.multiple_of(j * T, T)
            r = r_ref[pl.ds(off, T), :]          # slice resident replicas
        else:
            r = r_ref[...]

        # logits tile: contract D against D (a_sc @ r.T without materializing r.T)
        s = lax.dot_general(a_sc[...], r, (((1,), (1,)), ((), ())),
                            preferred_element_type=jnp.float32)

        # single exp with fixed stabilizer (|s| <= scale), shared by both CEs
        e = jnp.exp(s - scale)

        # row-direction statistics (CE(logits, gt))
        m_r[...] = jnp.maximum(m_r[...], jnp.max(s, axis=1, keepdims=True))
        l_r[...] = l_r[...] + jnp.sum(e, axis=1, keepdims=True)

        # column-direction statistics (CE(logits.T, gt))
        col_m[j] = jnp.maximum(col_m[j], jnp.max(s, axis=0, keepdims=True))
        col_l[j] = col_l[j] + jnp.sum(e, axis=0, keepdims=True)

        # diagonal tile: extract diag from s (consistent with m_r / col_m)
        @pl.when(i == j)
        def _():
            ridx = lax.broadcasted_iota(jnp.int32, (T, T), 0)
            cidx = lax.broadcasted_iota(jnp.int32, (T, T), 1)
            sd = jnp.where(ridx == cidx, s, 0.0)
            d_r[...] = jnp.sum(sd, axis=1, keepdims=True)   # (T,1)
            col_d[j] = jnp.sum(sd, axis=0, keepdims=True)   # (1,T)

        # row finalize (all column tiles of this row tile seen)
        @pl.when(j == nJ - 1)
        def _():
            lse_r = scale + jnp.log(jnp.maximum(l_r[...], _TINY))
            sums[0] = sums[0] + jnp.sum(lse_r - d_r[...])
            sums[2] = sums[2] + jnp.sum(
                (d_r[...] == m_r[...]).astype(jnp.float32))

        # column finalize (last row tile)
        @pl.when(i == nI - 1)
        def _():
            lse_c = scale + jnp.log(jnp.maximum(col_l[j], _TINY))
            sums[1] = sums[1] + jnp.sum(lse_c - col_d[j])
            sums[2] = sums[2] + jnp.sum(
                (col_d[j] == col_m[j]).astype(jnp.float32))

        # final outputs
        @pl.when((i == nI - 1) & (j == nJ - 1))
        def _():
            loss_ref[0, 0] = 0.5 * (sums[0] + sums[1]) / B
            acc_ref[0, 0] = sums[2] / (2.0 * B)

    r_spec = (pl.BlockSpec((B, D), lambda i, j: (0, 0)) if resident
              else pl.BlockSpec((T, D), lambda i, j: (j, 0)))

    loss, acc = pl.pallas_call(
        kernel,
        grid=(nI, nJ),
        in_specs=[
            pl.BlockSpec(memory_space=pltpu.SMEM),            # temperature (1,)
            pl.BlockSpec((1, D), lambda i, j: (0, 0)),         # inv column norms
            pl.BlockSpec((T, D), lambda i, j: (i, 0)),         # anchors row tile (f32)
            r_spec,                                            # replicas (bf16 stream)
        ],
        out_specs=(
            pl.BlockSpec(memory_space=pltpu.SMEM),             # loss (1,1)
            pl.BlockSpec(memory_space=pltpu.SMEM),             # accuracy (1,1)
        ),
        out_shape=(
            jax.ShapeDtypeStruct((1, 1), jnp.float32),
            jax.ShapeDtypeStruct((1, 1), jnp.float32),
        ),
        scratch_shapes=[
            pltpu.VMEM((T, D), mxu_dtype),         # a_sc: scaled anchors tile
            pltpu.VMEM((T, 1), jnp.float32),       # m_r: row running max
            pltpu.VMEM((T, 1), jnp.float32),       # l_r: row running sumexp
            pltpu.VMEM((T, 1), jnp.float32),       # d_r: diag values (row layout)
            pltpu.VMEM((nJ, 1, T), jnp.float32),   # col_m: column running max
            pltpu.VMEM((nJ, 1, T), jnp.float32),   # col_l: column running sumexp
            pltpu.VMEM((nJ, 1, T), jnp.float32),   # col_d: diag values (col layout)
            pltpu.SMEM((3,), jnp.float32),         # scalar accumulators
        ],
        compiler_params=pltpu.CompilerParams(
            dimension_semantics=("arbitrary", "arbitrary"),
            vmem_limit_bytes=vmem_limit,
        ),
    )(temperature, inv_cn, anchors_f32, replicas_mxu)
    return loss[0, 0], acc[0, 0]


def _reference(anchors, replicas, temperature):
    # pure-JAX f32 reference mirroring the PyTorch forward
    eps = 1e-12
    a_n = anchors / jnp.maximum(
        jnp.linalg.norm(anchors, axis=1, keepdims=True), eps)
    rT = replicas.T
    rT_n = rT / jnp.maximum(jnp.linalg.norm(rT, axis=1, keepdims=True), eps)
    logits = a_n @ rT_n * jnp.minimum(jnp.exp(temperature[0]), 100.0)
    B = anchors.shape[0]
    gt = jnp.arange(B)

    def ce(lg):
        lse = jax.scipy.special.logsumexp(lg, axis=1)
        return jnp.mean(lse - lg[jnp.arange(B), gt])

    loss = 0.5 * (ce(logits.T) + ce(logits))
    acc = (jnp.sum(jnp.argmax(logits, -1) == gt)
           + jnp.sum(jnp.argmax(logits.T, -1) == gt)) / (2.0 * B)
    return loss, acc


if __name__ == "__main__":
    B, D = 16, 32
    key = jax.random.PRNGKey(0)
    k_a, k_r = jax.random.split(key)
    anchors = jax.random.normal(k_a, (B, D), dtype=jnp.float32)
    replicas = jax.random.normal(k_r, (B, D), dtype=jnp.float32)
    # deterministic parameter init, as in the module: t_0 = 0.07
    temperature = jnp.array([0.07], dtype=jnp.float32)

    ref_loss, ref_acc = _reference(anchors, replicas, temperature)

    # 1) default bf16 path, multi-tile, resident replicas (auto) -> loose tol
    loss_b, acc_b = infonce_loss(anchors, replicas, temperature, tile=8)
    loss_b = jax.block_until_ready(loss_b)
    acc_b = jax.block_until_ready(acc_b)
    assert jnp.allclose(loss_b, ref_loss, rtol=2e-2, atol=2e-2), (loss_b, ref_loss)
    assert jnp.allclose(acc_b, ref_acc, rtol=0, atol=0.1), (acc_b, ref_acc)

    # 2) f32 path, multi-tile, streamed (non-resident) replicas -> tight tol
    loss_t, acc_t = infonce_loss(anchors, replicas, temperature, tile=8,
                                 use_bf16=False, resident=False)
    loss_t = jax.block_until_ready(loss_t)
    acc_t = jax.block_until_ready(acc_t)
    assert jnp.allclose(loss_t, ref_loss, rtol=1e-4, atol=1e-5), (loss_t, ref_loss)
    assert jnp.allclose(acc_t, ref_acc, rtol=0, atol=1e-6), (acc_t, ref_acc)

    # 3) f32 path, auto tile (single full tile) -> tight tol
    loss_s, acc_s = infonce_loss(anchors, replicas, temperature, use_bf16=False)
    loss_s = jax.block_until_ready(loss_s)
    acc_s = jax.block_until_ready(acc_s)
    assert jnp.allclose(loss_s, ref_loss, rtol=1e-4, atol=1e-5), (loss_s, ref_loss)
    assert jnp.allclose(acc_s, ref_acc, rtol=0, atol=1e-6), (acc_s, ref_acc)

    print("KERNEL_OK")
</pallas_src>

<mosaic_0001>
module attributes {stable_mosaic.version = 11 : i64} {
  func.func @_colnorm_kernel(%arg0: i32, %arg1: memref<8x32xf32, #tpu.memory_space<vmem>>, %arg2: memref<1x32xf32, #tpu.memory_space<vmem>>) attributes {dimension_semantics = [#tpu.dimension_semantics<arbitrary>], iteration_bounds = array<i64: 2>, scalar_prefetch = 0 : i64, scratch_operands = 0 : i64, tpu.core_type = #tpu.core_type<tc>, window_params = [{transform_indices = @transform_0, window_bounds = array<i64: 8, 32>}, {pipeline_mode = #tpu.pipeline_mode<synchronous>, transform_indices = @transform_1, window_bounds = array<i64: 1, 32>}]} {
    %c0_i32 = arith.constant 0 : i32
    %0 = arith.cmpi eq, %arg0, %c0_i32 : i32
    %1 = arith.extui %0 : i1 to i32
    %c0_i32_0 = arith.constant 0 : i32
    %2 = arith.cmpi ne, %1, %c0_i32_0 : i32
    scf.if %2 {
      %cst_7 = arith.constant 0.000000e+00 : f32
      %13 = vector.broadcast %cst_7 : f32 to vector<1x32xf32>
      %c0_8 = arith.constant 0 : index
      %c0_9 = arith.constant 0 : index
      %14 = vector.load %arg2[%c0_8, %c0_9] : memref<1x32xf32, #tpu.memory_space<vmem>>, vector<1x32xf32>
      tpu.vector_store %arg2[%c0_8, %c0_9], %13 {strides = array<i32>} : memref<1x32xf32, #tpu.memory_space<vmem>>, vector<1x32xf32>,
    } else {
    }
    %c0 = arith.constant 0 : index
    %c0_1 = arith.constant 0 : index
    %3 = vector.load %arg1[%c0, %c0_1] : memref<8x32xf32, #tpu.memory_space<vmem>>, vector<8x32xf32>
    %c0_2 = arith.constant 0 : index
    %c0_3 = arith.constant 0 : index
    %4 = vector.load %arg2[%c0_2, %c0_3] : memref<1x32xf32, #tpu.memory_space<vmem>>, vector<1x32xf32>
    %5 = arith.mulf %3, %3 : vector<8x32xf32>
    %cst = arith.constant dense<0.000000e+00> : vector<32xf32>
    %6 = vector.multi_reduction <add>, %5, %cst [0] : vector<8x32xf32> to vector<32xf32>
    %7 = vector.shape_cast %6 : vector<32xf32> to vector<1x32xf32>
    %8 = arith.addf %4, %7 : vector<1x32xf32>
    %c0_4 = arith.constant 0 : index
    %c0_5 = arith.constant 0 : index
    %9 = vector.load %arg2[%c0_4, %c0_5] : memref<1x32xf32, #tpu.memory_space<vmem>>, vector<1x32xf32>
    tpu.vector_store %arg2[%c0_4, %c0_5], %8 {strides = array<i32>} : memref<1x32xf32, #tpu.memory_space<vmem>>, vector<1x32xf32>,
    %c1_i32 = arith.constant 1 : i32
    %10 = arith.cmpi eq, %arg0, %c1_i32 : i32
    %11 = arith.extui %10 : i1 to i32
    %c0_i32_6 = arith.constant 0 : i32
    %12 = arith.cmpi ne, %11, %c0_i32_6 : i32
    scf.if %12 {
      %c0_7 = arith.constant 0 : index
      %c0_8 = arith.constant 0 : index
      %13 = vector.load %arg2[%c0_7, %c0_8] : memref<1x32xf32, #tpu.memory_space<vmem>>, vector<1x32xf32>
      %cst_9 = arith.constant 1.000000e-24 : f32
      %14 = vector.broadcast %cst_9 : f32 to vector<1x32xf32>
      %15 = arith.maximumf %13, %14 : vector<1x32xf32>
      %16 = math.rsqrt %15 : vector<1x32xf32>
      %c0_10 = arith.constant 0 : index
      %c0_11 = arith.constant 0 : index
      %17 = vector.load %arg2[%c0_10, %c0_11] : memref<1x32xf32, #tpu.memory_space<vmem>>, vector<1x32xf32>
      tpu.vector_store %arg2[%c0_10, %c0_11], %16 {strides = array<i32>} : memref<1x32xf32, #tpu.memory_space<vmem>>, vector<1x32xf32>,
    } else {
    }
    return
  }
  func.func @transform_0(%arg0: i32) -> (i32, i32) {
    %c0_i32 = arith.constant 0 : i32
    %c0_i32_0 = arith.constant 0 : i32
    return %arg0, %c0_i32 : i32, i32
  }
  func.func @transform_1(%arg0: i32) -> (i32, i32) {
    %c0_i32 = arith.constant 0 : i32
    %c0_i32_0 = arith.constant 0 : i32
    %c0_i32_1 = arith.constant 0 : i32
    return %c0_i32, %c0_i32_0 : i32, i32
  }
}

</mosaic_0001>

<llo_original>
// kernel: tpu_custom_call.1
$region0: #{tpu_custom_call.1}
  #allocation0 [shape = 'u32[]', space=smem, size = 0x4, offset = 0x4, fixed_abs, tag = 'smem constant byte address 0x4 - core index']
  #allocation1 [shape = 'u32[72,128]{1,0:T(1,128)}', space=vmem, size = 0x9000, scoped, tag = 'internal scratch']
  %s0 = inlined_call_operand.hbm [shape: f32[16,32], index: 0, kind: input, shape index: {}]
  %s1 = inlined_call_operand.hbm [shape: f32[1,32], index: 1, kind: output, shape index: {}]
  %s2 = sld [smem:[#allocation0]]
  $region49: #{tpu_custom_call.1} parent=0
    _
  %s4 = ssub.s32 1, %s2
  %s5 = scalar_select 0, %s4, %s2
  $region1: #{tpu_custom_call.1} parent=0
    #allocation2 [shape = 'u8[8192]{0}', space=vmem, size = 0x2000, scoped, tag = 'input window, operand 0']
    #allocation3 [shape = 's32[2]{0}', space=sflag, size = 0x8, scoped, tag = 'scoped memory for tpu_custom_call.1']
    #allocation4 [shape = 's32[2]{0}', space=sflag, size = 0x8, scoped, tag = 'scoped memory for tpu_custom_call.1']
    #allocation5 [shape = 'u8[512]{0}', space=vmem, size = 0x400, scoped, tag = 'output window, operand 0, single buffered']
    %6 = vsyncpa [#allocation3], 0
    %s7 = scalar_lea.sflag [#allocation3], 1
    %8 = vsyncpa %s7, 0
    %9 = vsyncpa [#allocation4], 0
    loop: start=0, step=1, limit=4
    $region2: #{tpu_custom_call.1} parent=1 // loop_pre_header
      _
    $region3: #{tpu_custom_call.1} parent=1 // loop_header
      %s11 = sphi 0, %s15
      %p12 = scmp.ge.s32.totalorder %s11, 4
      %s21 = sphi 0, %s23
      %s24 = sphi 0, %s21
      %s25 = sphi 0, %s24
      %s41 = sphi 0, %s25
      %s45 = sphi 0, %s45
      %s47 = sphi 0, %s45
      %s48 = sphi 0, %s47
      %s62 = sphi 0, %s48
    $region4: #{tpu_custom_call.1} parent=1 // loop_header_branch
      %14 = sbr.rel (%p12) target = $region8
    $region5: #{tpu_custom_call.1} parent=1 // loop_body
      %s16 = ssub.s32 %s11, 1
      %s17 = ssub.s32 %s11, 2
      %s18 = sadd.s32 %s11, 1
      %s19 = ssub.s32 %s11, %s18
      %p20 = scmp.eq.s32.totalorder %s19, 0
      %s22 = sadd.s32 %s21, 1
      %s23 = scalar_select %p20, %s21, %s22
      %p26 = pneg %p20
      %p27 = scmp.eq.s32.totalorder %s11, 1
      %p28 = por %p26, %p27
      %p29 = scmp.ne.s32.totalorder %s21, %s24
      %p30 = scmp.eq.s32.totalorder %s11, 0
      %p31 = por %p29, %p30
      %p32 = scmp.ne.s32.totalorder %s21, %s24
      %p33 = scmp.eq.s32.totalorder %s16, 1
      %p34 = por %p32, %p33
      %p35 = scmp.ne.s32.totalorder %s24, %s25
      %p36 = scmp.eq.s32.totalorder %s16, 0
      %p37 = por %p35, %p36
      %p38 = scmp.ne.s32.totalorder %s24, %s25
      %p39 = scmp.eq.s32.totalorder %s17, 1
      %p40 = por %p38, %p39
      %p42 = scmp.ne.s32.totalorder %s25, %s41
      %p43 = scmp.eq.s32.totalorder %s17, 0
      %p44 = por %p42, %p43
      %s46 = sadd.s32 %s45, 1
      %p49 = scmp.eq.s32.totalorder %s11, 1
      %p50 = scmp.ne.s32.totalorder %s45, %s47
      %p51 = scmp.eq.s32.totalorder %s11, 0
      %p52 = por %p50, %p51
      %p53 = scmp.ne.s32.totalorder %s45, %s47
      %p54 = scmp.eq.s32.totalorder %s16, 1
      %p55 = por %p53, %p54
      %p56 = scmp.ne.s32.totalorder %s47, %s48
      %p57 = scmp.eq.s32.totalorder %s16, 0
      %p58 = por %p56, %p57
      %p59 = scmp.ne.s32.totalorder %s47, %s48
      %p60 = scmp.eq.s32.totalorder %s17, 1
      %p61 = por %p59, %p60
      %p63 = scmp.ne.s32.totalorder %s48, %s62
      %p64 = scmp.eq.s32.totalorder %s17, 0
      %p65 = por %p63, %p64
      %p66 = scmp.le.s32.totalorder 1, %s11
      %p67 = scmp.lt.s32.totalorder %s11, 3
      %p68 = pnand %p66, %p67
      %p69 = pneg %p68
      // Predicated region
      $region9: #{tpu_custom_call.1} parent=5 // pred_check
        _
      $region10: #{tpu_custom_call.1} parent=5 // pred_check_branch
        %71 = sbr.rel (%p68) target = $region12
      $region11: #{tpu_custom_call.1} parent=5 // pred_region
        %s72 = ssub.s32 %s11, 1
      $region12: #{tpu_custom_call.1} parent=5 // pred_fallthru
        _
      %p73 = scmp.lt.s32.totalorder %s11, 2
      // Predicated region
      $region13: #{tpu_custom_call.1} parent=5 // pred_check
        %p74 = pneg %p73
      $region14: #{tpu_custom_call.1} parent=5 // pred_check_branch
        %76 = sbr.rel (%p74) target = $region16
      $region15: #{tpu_custom_call.1} parent=5 // pred_region
        // Predicated region
        $region17: #{tpu_custom_call.1} parent=15 // pred_check
          %p77 = pneg %p31
        $region18: #{tpu_custom_call.1} parent=15 // pred_check_branch
          %79 = sbr.rel (%p77) target = $region20
        $region19: #{tpu_custom_call.1} parent=15 // pred_region
          %s80 = sand.u32 %s21, 1
          %s81 = scalar_lea.sflag [#allocation3], %s80
          %s82 = sand.u32 %s21, 1
          %s83 = smul.addr %s82, 8
          %s84 = scalar_lea.vmem [#allocation2], %s83
          %86 = vsyncadd %s81, 0
          %s87 = smul.addr %s11, 8
          %s88 = scalar_lea.hbm %s0, %s87
          %s90 = sshll.u32 %s88, 4
          %s91 = int_to_ptr.hbm [resolvable:$true] %s90
          %s92 = sshll.u32 %s84, 4
          %s93 = int_to_ptr.vmem [resolvable:$true] %s92
          %95 = dma.hbm_to_vmem [thread:$0]  %s91, 128, %s93, %s81
        $region20: #{tpu_custom_call.1} parent=15 // pred_fallthru
          _
      $region16: #{tpu_custom_call.1} parent=5 // pred_fallthru
        _
      %p96 = scmp.le.s32.totalorder 1, %s11
      %p97 = scmp.lt.s32.totalorder %s11, 3
      %p98 = pnand %p96, %p97
      %p99 = pneg %p98
      // Predicated region
      $region21: #{tpu_custom_call.1} parent=5 // pred_check
        _
      $region22: #{tpu_custom_call.1} parent=5 // pred_check_branch
        %101 = sbr.rel (%p98) target = $region24
      $region23: #{tpu_custom_call.1} parent=5 // pred_region
        %s102 = ssub.s32 %s11, 1
        %s103 = sand.u32 %s24, 1
        %s104 = scalar_lea.sflag [#allocation3], %s103
        %s105 = sand.u32 %s24, 1
        %s106 = smul.addr %s105, 8
        %s107 = scalar_lea.vmem [#allocation2], %s106
        // Predicated region
        $region25: #{tpu_custom_call.1} parent=23 // pred_check
          %p108 = pneg %p37
        $region26: #{tpu_custom_call.1} parent=23 // pred_check_branch
          %110 = sbr.rel (%p108) target = $region28
        $region27: #{tpu_custom_call.1} parent=23 // pred_region
          %112 = dma.done %s104, 128
        $region28: #{tpu_custom_call.1} parent=23 // pred_fallthru
          _
        %s113 = sand.u32 %s24, 1
        %s114 = scalar_lea.sflag [#allocation3], %s113
        %s115 = sand.u32 %s24, 1
        %s116 = smul.addr %s115, 8
        %s117 = scalar_lea.vmem [#allocation2], %s116
        %p118 = pneg %p37
        %p119 = pneg %p34
        %p120 = pneg %p58
        %p121 = pneg %p55
        %p122 = scmp.eq.s32.totalorder %s16, 0
        // Predicated region
        $region29: #{tpu_custom_call.1} parent=23 // pred_check
          %p123 = pneg %p122
        $region30: #{tpu_custom_call.1} parent=23 // pred_check_branch
          %125 = sbr.rel (%p123) target = $region32
        $region31: #{tpu_custom_call.1} parent=23 // pred_region
          %vm126 = vcmask 253952
          %127 = vst.msk [vmem:[#allocation5] sm:$0x1] %vm126, 0.0
        $region32: #{tpu_custom_call.1} parent=23 // pred_fallthru
          _
        %v128 = vld [vmem:[%s107] sm:$0xff]
        %v129 = vld [vmem:[#allocation5] sm:$0x1]
        %v130 = vmul.f32 %v128, %v128
        %vm131 = vcmask 261120
        %v132 = vsel %vm131, %v130, 0.0
        %v133 = vrot.slane %v132, 4
        %v134 = vadd.f32 %v132, %v133
        %v135 = vrot.slane %v134, 2
        %v136 = vadd.f32 %v134, %v135
        %v137 = vrot.slane %v136, 1
        %v138 = vadd.f32 %v136, %v137
        %v139 = vadd.f32 %v129, %v138
        %vm140 = vcmask 253952
        %141 = vst.msk [vmem:[#allocation5] sm:$0x1] %vm140, %v139
        %p142 = scmp.eq.s32.totalorder %s16, 1
        // Predicated region
        $region33: #{tpu_custom_call.1} parent=23 // pred_check
          %p143 = pneg %p142
        $region34: #{tpu_custom_call.1} parent=23 // pred_check_branch
          %145 = sbr.rel (%p143) target = $region36
        $region35: #{tpu_custom_call.1} parent=23 // pred_region
          %v146 = vld [vmem:[#allocation5] sm:$0x1]
          %v147 = vmax.f32 %v146, 1e-24
          %v148 = vrsqrt.pop %v147
          %v149 = vmul.f32 %v148, %v147
          %v150 = vmul.f32 %v149, %v148
          %v151 = vmul.f32 0.5, %v150
          %v152 = vsub.f32 1.5, %v151
          %v153 = vmul.f32 %v148, %v152
          %vm154 = vweird.f32 %v147
          %vm155 = vweird.f32 %v148
          %vm156 = vmor %vm154, %vm155
          %v157 = vsel %vm156, %v148, %v153
          %158 = vst.msk [vmem:[#allocation5] sm:$0x1] %vm140, %v157
        $region36: #{tpu_custom_call.1} parent=23 // pred_fallthru
          _
        // Predicated region
        $region37: #{tpu_custom_call.1} parent=23 // pred_check
          %p159 = pneg %p55
        $region38: #{tpu_custom_call.1} parent=23 // pred_check_branch
          %161 = sbr.rel (%p159) target = $region40
        $region39: #{tpu_custom_call.1} parent=23 // pred_region
          %163 = vsyncadd [#allocation4], 0
          %s165 = sshll.u32 [#allocation5], 4
          %s166 = int_to_ptr.vmem [resolvable:$true] %s165
          %s167 = sshll.u32 %s1, 4
          %s168 = int_to_ptr.hbm [resolvable:$true] %s167
          %170 = dma.vmem_to_hbm [thread:$0]  %s166, 16, %s168, [#allocation4]
        $region40: #{tpu_custom_call.1} parent=23 // pred_fallthru
          _
        // Predicated region
        $region41: #{tpu_custom_call.1} parent=23 // pred_check
          %p171 = pneg %p55
        $region42: #{tpu_custom_call.1} parent=23 // pred_check_branch
          %173 = sbr.rel (%p171) target = $region44
        $region43: #{tpu_custom_call.1} parent=23 // pred_region
          %175 = dma.done [#allocation4], 16
        $region44: #{tpu_custom_call.1} parent=23 // pred_fallthru
          _
      $region24: #{tpu_custom_call.1} parent=5 // pred_fallthru
        _
      %p176 = scmp.le.s32.totalorder 2, %s11
      // Predicated region
      $region45: #{tpu_custom_call.1} parent=5 // pred_check
        %p177 = pneg %p176
      $region46: #{tpu_custom_call.1} parent=5 // pred_check_branch
        %179 = sbr.rel (%p177) target = $region48
      $region47: #{tpu_custom_call.1} parent=5 // pred_region
        %s180 = ssub.s32 %s11, 2
      $region48: #{tpu_custom_call.1} parent=5 // pred_fallthru
        _
    $region6: #{tpu_custom_call.1} parent=1 // loop_footer
      %s15 = sadd.s32 1, %s11
    $region7: #{tpu_custom_call.1} parent=1 // loop_footer_branch
      %10 = sbr.rel target = $region3
    $region8: #{tpu_custom_call.1} parent=1 // loop_exit
      _
    %181 = vsyncpa [#allocation3], 1
    %s182 = scalar_lea.sflag [#allocation3], 1
    %183 = vsyncpa %s182, 1
    %184 = vsyncpa [#allocation4], 1
    %s185 = scalar_lea.sflag [#allocation4], 1
    %186 = vsyncpa %s185, 1

</llo_original>
